<compile_context>
chip_gen: v7x
topology: tpu7x:2x2x1
jax: 0.10.0
libtpu: 0.0.40
codegen_flags: <defaults>
</compile_context>

<pallas_src>
import functools

import numpy as np

import jax
import jax.numpy as jnp
from jax import lax
from jax.experimental import pallas as pl
from jax.experimental.pallas import tpu as pltpu

_NEG_INF = -1.0e30  # finite "minus infinity" for padded key columns


def _patch_nce_kernel(q_ref, k_ref, kd_ref, loss_ref, qs_sc, m_sc, l_sc, *,
                      inv_T, npatches, npad, tile_q, tile_k, matmul_dtype):
    qi = pl.program_id(1)
    ki = pl.program_id(2)
    nkt = pl.num_programs(2)

    @pl.when(ki == 0)
    def _init():
        m_sc[...] = jnp.full(m_sc.shape, -jnp.inf, dtype=m_sc.dtype)
        l_sc[...] = jnp.zeros(l_sc.shape, dtype=l_sc.dtype)
        # Fold 1/nce_T once per q tile *in f32*, then cast to the MXU input
        # dtype; reused for all nkt key steps (the q block itself stays
        # resident across the k axis, this just avoids per-step rescale+cast).
        qs_sc[...] = (q_ref[...].astype(jnp.float32)
                      * jnp.float32(inv_T)).astype(matmul_dtype)

    k = k_ref[...].astype(matmul_dtype)
    # s[i, j] = <q_i, k_j> / T ; contract dim 1 of both operands (no explicit
    # (D, tile_k) transposed copy), f32 accumulation on the MXU.
    s = lax.dot_general(
        qs_sc[...], k,
        dimension_numbers=(((1,), (1,)), ((), ())),
        preferred_element_type=jnp.float32,
    )  # (tile_q, tile_k) f32

    if npad != npatches:
        # Padded key columns (group padded up to an MXU/(8,128)-friendly size)
        # must not contribute to the logsumexp.
        col = lax.broadcasted_iota(jnp.int32, s.shape, 1) + ki * tile_k
        s = jnp.where(col < npatches, s, _NEG_INF)

    # Online (flash-style) logsumexp over the key axis, unmasked w.r.t. the
    # diagonal (handled just below).
    m_prev = m_sc[...]
    m_new = jnp.maximum(m_prev, jnp.max(s, axis=1, keepdims=True))   # (tq, 1)
    p = jnp.exp(s - m_new)
    alpha = jnp.exp(m_prev - m_new)
    l_sc[...] = alpha * l_sc[...] + jnp.sum(p, axis=1, keepdims=True)
    m_sc[...] = m_new

    # Only k tiles that intersect this q tile's diagonal do masking work:
    # subtract exactly the exp terms the unmasked update added for the
    # self-similarity entries (exact cancellation, any tile_q/tile_k ratio).
    ratio = tile_q // tile_k

    @pl.when(jnp.logical_and(ki >= qi * ratio, ki < (qi + 1) * ratio))
    def _diag():
        r_g = lax.broadcasted_iota(jnp.int32, s.shape, 0) + qi * tile_q
        c_g = lax.broadcasted_iota(jnp.int32, s.shape, 1) + ki * tile_k
        l_sc[...] = l_sc[...] - jnp.sum(
            jnp.where(r_g == c_g, p, 0.0), axis=1, keepdims=True)

    # Last key tile: positive logit (exact f32, matching the reference's
    # full-precision l_pos) plus the masked -10/T slot, then CE vs class 0.
    @pl.when(ki == nkt - 1)
    def _finalize():
        pos = jnp.sum(
            q_ref[...].astype(jnp.float32) * jnp.float32(inv_T)
            * kd_ref[...].astype(jnp.float32),
            axis=1, keepdims=True)                                  # (tq, 1)
        masked_slot = jnp.float32(-10.0 * inv_T)
        m = m_sc[...]
        m_all = jnp.maximum(jnp.maximum(m, pos), masked_slot)
        total = (l_sc[...] * jnp.exp(m - m_all)
                 + jnp.exp(pos - m_all)
                 + jnp.exp(masked_slot - m_all))
        loss_ref[...] = m_all + jnp.log(total) - pos


_TQ_CANDIDATES = (512, 256, 128, 64, 32, 16)
_TK_CANDIDATES = (256, 128, 64, 32, 16)


def _round_up(x, m):
    return -(-x // m) * m


def _choose_tiles(npatches, batch_size):
    # Pad each group up to a 128-aligned size (32 for tiny groups) so tiles
    # stay MXU / (8,128) / bf16-(16,128) friendly and the logits working set
    # never depends on an odd whole-group tile.
    npad = _round_up(npatches, 128 if npatches >= 128 else 32)
    # tile_q large (amortizes the nkt-fold re-read of the key group); tile_k
    # capped at 256 (256-wide MXU output, bounded f32 logits intermediate,
    # finer-grained k prefetch steps).
    tile_q = next(t for t in _TQ_CANDIDATES if npad % t == 0)
    tile_k = next(t for t in _TK_CANDIDATES if npad % t == 0)
    # Keep >= 2 grid points on the parallel (batch, q-tile) axes so both of
    # v7x's TensorCores get work and the k pipeline has something to overlap.
    if batch_size * (npad // tile_q) < 2:
        half = tile_q // 2
        if half >= 16 and npad % half == 0:
            tile_q = half
    tile_k = min(tile_k, tile_q)   # power-of-two tiles -> tile_q % tile_k == 0
    return npad, tile_q, tile_k


def patch_nce_loss(feat_q, feat_k, *, batch_size=1, nce_T=0.07,
                   matmul_dtype=None):
    """Pallas PatchNCELoss.forward -> per-row loss of shape (N_total,).

    matmul_dtype: dtype fed to the MXU for the (q @ k^T) negatives.  Defaults
    to bf16 when the inputs are f32 (4-8x faster matmul); the positive logit
    and all softmax math stay exact f32.  Pass jnp.float32 for bit-faithful
    f32 logits.  (feat_k.detach() is autograd-only; the forward is identical.)
    """
    N, D = feat_q.shape
    if N % batch_size:
        raise ValueError("N_total must be divisible by batch_size")
    npatches = N // batch_size
    if matmul_dtype is None:
        matmul_dtype = (jnp.bfloat16 if feat_q.dtype == jnp.float32
                        else feat_q.dtype)
    matmul_dtype = np.dtype(matmul_dtype)

    npad, tq, tk = _choose_tiles(npatches, batch_size)
    nqt, nkt = npad // tq, npad // tk
    inv_T = 1.0 / float(nce_T)

    if npad != npatches:
        pad = npad - npatches
        q_in = jnp.pad(feat_q.reshape(batch_size, npatches, D),
                       ((0, 0), (0, pad), (0, 0))).reshape(batch_size * npad, D)
        k_in = jnp.pad(feat_k.reshape(batch_size, npatches, D),
                       ((0, 0), (0, pad), (0, 0))).reshape(batch_size * npad, D)
    else:
        q_in, k_in = feat_q, feat_k

    # BlockSpecs: q and the diagonal-aligned k block depend only on (b, qi)
    # -> kept resident across the k axis; the streamed k block gets 3-deep
    # pipelining when there are enough k steps (hides the K DMA on v5e).
    q_spec = pl.BlockSpec((tq, D), lambda b, qi, ki: (b * nqt + qi, 0))
    kd_spec = pl.BlockSpec((tq, D), lambda b, qi, ki: (b * nqt + qi, 0))
    if nkt >= 3:
        k_spec = pl.BlockSpec((tk, D), lambda b, qi, ki: (b * nkt + ki, 0),
                              pipeline_mode=pl.Buffered(3))
    else:
        k_spec = pl.BlockSpec((tk, D), lambda b, qi, ki: (b * nkt + ki, 0))

    itemsize = q_in.dtype.itemsize
    cbytes = matmul_dtype.itemsize
    k_bufs = 3 if nkt >= 3 else 2
    vmem_est = (2 * tq * D * itemsize          # q block (double-buffered)
                + 2 * tq * D * itemsize        # diagonal-aligned k block
                + k_bufs * tk * D * itemsize   # streamed k blocks
                + tq * D * cbytes              # scaled-q scratch
                + 4 * tq * tk * 4              # logits/exp intermediates
                + 2 * tq * 128 * 4             # m/l scratches (lane-padded)
                + 2 * tq * 128 * 4)            # output block
    # Explicit limit: above the 16/32 MiB scoped defaults, below v7x's 64 MiB.
    vmem_limit = int(min(max(2 * vmem_est, 32 * 1024 * 1024),
                         56 * 1024 * 1024))

    cost = pl.CostEstimate(
        flops=2 * batch_size * npad * D * (npad + 1),
        transcendentals=batch_size * npad * (npad + nkt + 3),
        bytes_accessed=(2 * batch_size * npad * D * itemsize
                        + nqt * batch_size * npad * D * itemsize
                        + batch_size * npad * 4),
    )

    loss = pl.pallas_call(
        functools.partial(_patch_nce_kernel, inv_T=inv_T, npatches=npatches,
                          npad=npad, tile_q=tq, tile_k=tk,
                          matmul_dtype=matmul_dtype),
        out_shape=jax.ShapeDtypeStruct((batch_size * npad, 1), jnp.float32),
        grid=(batch_size, nqt, nkt),
        in_specs=[q_spec, k_spec, kd_spec],
        out_specs=pl.BlockSpec((tq, 1), lambda b, qi, ki: (b * nqt + qi, 0)),
        scratch_shapes=[
            pltpu.VMEM((tq, D), matmul_dtype),   # q / nce_T in the MXU dtype
            pltpu.VMEM((tq, 1), jnp.float32),    # running max
            pltpu.VMEM((tq, 1), jnp.float32),    # running sum of exp
        ],
        compiler_params=pltpu.CompilerParams(
            dimension_semantics=("parallel", "parallel", "arbitrary"),
            vmem_limit_bytes=vmem_limit),
        cost_estimate=cost,
    )(q_in, k_in, k_in)

    if npad != npatches:
        loss = loss.reshape(batch_size, npad)[:, :npatches]
    return loss.reshape(-1)


def _reference(feat_q, feat_k, *, batch_size=1, nce_T=0.07,
               matmul_dtype=jnp.float32):
    # Pure-JAX reference mirroring the PyTorch module (1/T folded into q in
    # f32; l_pos always exact f32; the negatives' matmul uses matmul_dtype).
    N, D = feat_q.shape
    inv_T = 1.0 / float(nce_T)
    qf = feat_q.astype(jnp.float32) * inv_T
    kf = feat_k.astype(jnp.float32)
    l_pos = jnp.sum(qf * kf, axis=-1, keepdims=True)                 # (N, 1)
    qb = qf.astype(matmul_dtype).reshape(batch_size, -1, D)
    kb = kf.astype(matmul_dtype).reshape(batch_size, -1, D)
    npatches = qb.shape[1]
    l_neg = jnp.einsum("bnd,bmd->bnm", qb, kb,
                       preferred_element_type=jnp.float32)
    eye = jnp.eye(npatches, dtype=bool)[None]
    l_neg = jnp.where(eye, -10.0 * inv_T, l_neg).reshape(-1, npatches)
    out = jnp.concatenate([l_pos, l_neg], axis=1)
    return jax.nn.logsumexp(out, axis=1) - out[:, 0]


if __name__ == "__main__":
    keys = jax.random.split(jax.random.PRNGKey(0), 8)

    # Case 1: tiny config + padding path (npatches=8 -> padded to 32), exact
    # f32 MXU path, two groups.
    q1 = jax.random.normal(keys[0], (16, 32), dtype=jnp.float32)
    k1 = jax.random.normal(keys[1], (16, 32), dtype=jnp.float32)
    out1 = jax.block_until_ready(
        patch_nce_loss(q1, k1, batch_size=2, nce_T=0.07,
                       matmul_dtype=jnp.float32))
    ref1 = _reference(q1, k1, batch_size=2, nce_T=0.07,
                      matmul_dtype=jnp.float32)
    assert out1.shape == (16,)
    assert jnp.allclose(out1, ref1, atol=1e-3, rtol=1e-4), (out1, ref1)

    # Case 2: multi-tile online logsumexp (npatches=384 -> 128x128 tiles),
    # default bf16 MXU path (reference uses the same bf16-rounded logits).
    q2 = jax.random.normal(keys[2], (768, 64), dtype=jnp.float32)
    k2 = jax.random.normal(keys[3], (768, 64), dtype=jnp.float32)
    out2 = jax.block_until_ready(patch_nce_loss(q2, k2, batch_size=2))
    ref2 = _reference(q2, k2, batch_size=2, matmul_dtype=jnp.bfloat16)
    assert out2.shape == (768,)
    assert jnp.allclose(out2, ref2, atol=1e-2, rtol=1e-3), (out2, ref2)

    # Case 3: batch_size=1 single-q-tile group -> tile_q gets halved so both
    # TensorCores of a v7x have work (npatches=512 -> 256x256 tiles), f32 MXU.
    q3 = jax.random.normal(keys[4], (512, 64), dtype=jnp.float32)
    k3 = jax.random.normal(keys[5], (512, 64), dtype=jnp.float32)
    out3 = jax.block_until_ready(
        patch_nce_loss(q3, k3, batch_size=1, matmul_dtype=jnp.float32))
    ref3 = _reference(q3, k3, batch_size=1, matmul_dtype=jnp.float32)
    assert out3.shape == (512,)
    assert jnp.allclose(out3, ref3, atol=1e-3, rtol=1e-4), (out3, ref3)

    # Case 4: tile_q (512) != tile_k (256): the group diagonal spans two key
    # tiles per q tile; default bf16 MXU path.
    q4 = jax.random.normal(keys[6], (1024, 64), dtype=jnp.float32)
    k4 = jax.random.normal(keys[7], (1024, 64), dtype=jnp.float32)
    out4 = jax.block_until_ready(patch_nce_loss(q4, k4, batch_size=1))
    ref4 = _reference(q4, k4, batch_size=1, matmul_dtype=jnp.bfloat16)
    assert out4.shape == (1024,)
    assert jnp.allclose(out4, ref4, atol=1e-2, rtol=1e-3), (out4, ref4)

    print("KERNEL_OK")
</pallas_src>

<mosaic_0001>
module attributes {stable_mosaic.version = 11 : i64} {
  func.func @_patch_nce_kernel(%arg0: i32, %arg1: i32, %arg2: i32, %arg3: memref<32x32xf32, #tpu.memory_space<vmem>>, %arg4: memref<32x32xf32, #tpu.memory_space<vmem>>, %arg5: memref<32x32xf32, #tpu.memory_space<vmem>>, %arg6: memref<32x1xf32, #tpu.memory_space<vmem>>, %arg7: memref<32x32xf32, #tpu.memory_space<vmem>>, %arg8: memref<32x1xf32, #tpu.memory_space<vmem>>, %arg9: memref<32x1xf32, #tpu.memory_space<vmem>>) attributes {dimension_semantics = [#tpu.dimension_semantics<parallel>, #tpu.dimension_semantics<parallel>, #tpu.dimension_semantics<arbitrary>], iteration_bounds = array<i64: 2, 1, 1>, scalar_prefetch = 0 : i64, scratch_operands = 3 : i64, tpu.core_type = #tpu.core_type<tc>, window_params = [{transform_indices = @transform_0, window_bounds = array<i64: 32, 32>}, {transform_indices = @transform_1, window_bounds = array<i64: 32, 32>}, {transform_indices = @transform_2, window_bounds = array<i64: 32, 32>}, {transform_indices = @transform_3, window_bounds = array<i64: 32, 1>}]} {
    %c0_i32 = arith.constant 0 : i32
    %0 = arith.cmpi eq, %arg2, %c0_i32 : i32
    %1 = arith.extui %0 : i1 to i32
    %c0_i32_0 = arith.constant 0 : i32
    %2 = arith.cmpi ne, %1, %c0_i32_0 : i32
    scf.if %2 {
      %cst_20 = arith.constant 0xFF800000 : f32
      %41 = vector.broadcast %cst_20 : f32 to vector<32x1xf32>
      %c0_21 = arith.constant 0 : index
      %c0_22 = arith.constant 0 : index
      %42 = vector.load %arg8[%c0_21, %c0_22] : memref<32x1xf32, #tpu.memory_space<vmem>>, vector<32x1xf32>
      tpu.vector_store %arg8[%c0_21, %c0_22], %41 {strides = array<i32>} : memref<32x1xf32, #tpu.memory_space<vmem>>, vector<32x1xf32>,
      %cst_23 = arith.constant 0.000000e+00 : f32
      %43 = vector.broadcast %cst_23 : f32 to vector<32x1xf32>
      %c0_24 = arith.constant 0 : index
      %c0_25 = arith.constant 0 : index
      %44 = vector.load %arg9[%c0_24, %c0_25] : memref<32x1xf32, #tpu.memory_space<vmem>>, vector<32x1xf32>
      tpu.vector_store %arg9[%c0_24, %c0_25], %43 {strides = array<i32>} : memref<32x1xf32, #tpu.memory_space<vmem>>, vector<32x1xf32>,
      %c0_26 = arith.constant 0 : index
      %c0_27 = arith.constant 0 : index
      %45 = vector.load %arg3[%c0_26, %c0_27] : memref<32x32xf32, #tpu.memory_space<vmem>>, vector<32x32xf32>
      %cst_28 = arith.constant 14.2857141 : f32
      %46 = vector.broadcast %cst_28 : f32 to vector<32x32xf32>
      %47 = arith.mulf %45, %46 : vector<32x32xf32>
      %c0_29 = arith.constant 0 : index
      %c0_30 = arith.constant 0 : index
      %48 = vector.load %arg7[%c0_29, %c0_30] : memref<32x32xf32, #tpu.memory_space<vmem>>, vector<32x32xf32>
      tpu.vector_store %arg7[%c0_29, %c0_30], %47 {strides = array<i32>} : memref<32x32xf32, #tpu.memory_space<vmem>>, vector<32x32xf32>,
    } else {
    }
    %c0 = arith.constant 0 : index
    %c0_1 = arith.constant 0 : index
    %3 = vector.load %arg4[%c0, %c0_1] : memref<32x32xf32, #tpu.memory_space<vmem>>, vector<32x32xf32>
    %c0_2 = arith.constant 0 : index
    %c0_3 = arith.constant 0 : index
    %4 = vector.load %arg7[%c0_2, %c0_3] : memref<32x32xf32, #tpu.memory_space<vmem>>, vector<32x32xf32>
    %cst = arith.constant dense<0.000000e+00> : vector<32x32xf32>
    %5 = tpu.matmul %4, %3, %cst {dimension_numbers = #tpu.dot_dimension_numbers<[1], [1], [0], [0], [0, 0, 1, 0], [], []>} : vector<32x32xf32>, vector<32x32xf32>, vector<32x32xf32> -> vector<32x32xf32>
    %6 = tpu.iota {dimensions = array<i32: 1>} : vector<32x32xi32>
    %c32_i32 = arith.constant 32 : i32
    %7 = arith.muli %arg2, %c32_i32 : i32
    %8 = vector.broadcast %7 : i32 to vector<32x32xi32>
    %9 = arith.addi %6, %8 : vector<32x32xi32>
    %c8_i32 = arith.constant 8 : i32
    %10 = vector.broadcast %c8_i32 : i32 to vector<32x32xi32>
    %11 = arith.cmpi slt, %9, %10 : vector<32x32xi32>
    %cst_4 = arith.constant -1.000000e+30 : f32
    %12 = vector.broadcast %cst_4 : f32 to vector<32x32xf32>
    %13 = arith.select %11, %5, %12 : vector<32x32xi1>, vector<32x32xf32>
    %c0_5 = arith.constant 0 : index
    %c0_6 = arith.constant 0 : index
    %14 = vector.load %arg8[%c0_5, %c0_6] : memref<32x1xf32, #tpu.memory_space<vmem>>, vector<32x1xf32>
    %cst_7 = arith.constant dense<0xFF800000> : vector<32xf32>
    %15 = vector.multi_reduction <maximumf>, %13, %cst_7 [1] : vector<32x32xf32> to vector<32xf32>
    %16 = vector.shape_cast %15 : vector<32xf32> to vector<32x1xf32>
    %17 = arith.maximumf %14, %16 : vector<32x1xf32>
    %18 = vector.broadcast %17 : vector<32x1xf32> to vector<32x32xf32>
    %19 = arith.subf %13, %18 : vector<32x32xf32>
    %20 = math.exp %19 : vector<32x32xf32>
    %21 = arith.subf %14, %17 : vector<32x1xf32>
    %22 = math.exp %21 : vector<32x1xf32>
    %c0_8 = arith.constant 0 : index
    %c0_9 = arith.constant 0 : index
    %23 = vector.load %arg9[%c0_8, %c0_9] : memref<32x1xf32, #tpu.memory_space<vmem>>, vector<32x1xf32>
    %24 = arith.mulf %22, %23 : vector<32x1xf32>
    %cst_10 = arith.constant dense<0.000000e+00> : vector<32xf32>
    %25 = vector.multi_reduction <add>, %20, %cst_10 [1] : vector<32x32xf32> to vector<32xf32>
    %26 = vector.shape_cast %25 : vector<32xf32> to vector<32x1xf32>
    %27 = arith.addf %24, %26 : vector<32x1xf32>
    %c0_11 = arith.constant 0 : index
    %c0_12 = arith.constant 0 : index
    %28 = vector.load %arg9[%c0_11, %c0_12] : memref<32x1xf32, #tpu.memory_space<vmem>>, vector<32x1xf32>
    tpu.vector_store %arg9[%c0_11, %c0_12], %27 {strides = array<i32>} : memref<32x1xf32, #tpu.memory_space<vmem>>, vector<32x1xf32>,
    %c0_13 = arith.constant 0 : index
    %c0_14 = arith.constant 0 : index
    %29 = vector.load %arg8[%c0_13, %c0_14] : memref<32x1xf32, #tpu.memory_space<vmem>>, vector<32x1xf32>
    tpu.vector_store %arg8[%c0_13, %c0_14], %17 {strides = array<i32>} : memref<32x1xf32, #tpu.memory_space<vmem>>, vector<32x1xf32>,
    %c1_i32 = arith.constant 1 : i32
    %30 = arith.muli %arg1, %c1_i32 : i32
    %31 = arith.cmpi sge, %arg2, %30 : i32
    %c1_i32_15 = arith.constant 1 : i32
    %32 = arith.addi %arg1, %c1_i32_15 : i32
    %c1_i32_16 = arith.constant 1 : i32
    %33 = arith.muli %32, %c1_i32_16 : i32
    %34 = arith.cmpi slt, %arg2, %33 : i32
    %35 = arith.andi %31, %34 : i1
    %36 = arith.extui %35 : i1 to i32
    %c0_i32_17 = arith.constant 0 : i32
    %37 = arith.cmpi ne, %36, %c0_i32_17 : i32
    scf.if %37 {
      %41 = tpu.iota {dimensions = array<i32: 0>} : vector<32x32xi32>
      %c32_i32_20 = arith.constant 32 : i32
      %42 = arith.muli %arg1, %c32_i32_20 : i32
      %43 = vector.broadcast %42 : i32 to vector<32x32xi32>
      %44 = arith.addi %41, %43 : vector<32x32xi32>
      %45 = tpu.iota {dimensions = array<i32: 1>} : vector<32x32xi32>
      %c32_i32_21 = arith.constant 32 : i32
      %46 = arith.muli %arg2, %c32_i32_21 : i32
      %47 = vector.broadcast %46 : i32 to vector<32x32xi32>
      %48 = arith.addi %45, %47 : vector<32x32xi32>
      %c0_22 = arith.constant 0 : index
      %c0_23 = arith.constant 0 : index
      %49 = vector.load %arg9[%c0_22, %c0_23] : memref<32x1xf32, #tpu.memory_space<vmem>>, vector<32x1xf32>
      %50 = arith.cmpi eq, %44, %48 : vector<32x32xi32>
      %cst_24 = arith.constant 0.000000e+00 : f32
      %51 = vector.broadcast %cst_24 : f32 to vector<32x32xf32>
      %52 = arith.select %50, %20, %51 : vector<32x32xi1>, vector<32x32xf32>
      %cst_25 = arith.constant dense<0.000000e+00> : vector<32xf32>
      %53 = vector.multi_reduction <add>, %52, %cst_25 [1] : vector<32x32xf32> to vector<32xf32>
      %54 = vector.shape_cast %53 : vector<32xf32> to vector<32x1xf32>
      %55 = arith.subf %49, %54 : vector<32x1xf32>
      %c0_26 = arith.constant 0 : index
      %c0_27 = arith.constant 0 : index
      %56 = vector.load %arg9[%c0_26, %c0_27] : memref<32x1xf32, #tpu.memory_space<vmem>>, vector<32x1xf32>
      tpu.vector_store %arg9[%c0_26, %c0_27], %55 {strides = array<i32>} : memref<32x1xf32, #tpu.memory_space<vmem>>, vector<32x1xf32>,
    } else {
    }
    %c0_i32_18 = arith.constant 0 : i32
    %38 = arith.cmpi eq, %arg2, %c0_i32_18 : i32
    %39 = arith.extui %38 : i1 to i32
    %c0_i32_19 = arith.constant 0 : i32
    %40 = arith.cmpi ne, %39, %c0_i32_19 : i32
    scf.if %40 {
      %c0_20 = arith.constant 0 : index
      %c0_21 = arith.constant 0 : index
      %41 = vector.load %arg3[%c0_20, %c0_21] : memref<32x32xf32, #tpu.memory_space<vmem>>, vector<32x32xf32>
      %cst_22 = arith.constant 14.2857141 : f32
      %42 = vector.broadcast %cst_22 : f32 to vector<32x32xf32>
      %43 = arith.mulf %41, %42 : vector<32x32xf32>
      %c0_23 = arith.constant 0 : index
      %c0_24 = arith.constant 0 : index
      %44 = vector.load %arg5[%c0_23, %c0_24] : memref<32x32xf32, #tpu.memory_space<vmem>>, vector<32x32xf32>
      %45 = arith.mulf %43, %44 : vector<32x32xf32>
      %cst_25 = arith.constant dense<0.000000e+00> : vector<32xf32>
      %46 = vector.multi_reduction <add>, %45, %cst_25 [1] : vector<32x32xf32> to vector<32xf32>
      %47 = vector.shape_cast %46 : vector<32xf32> to vector<32x1xf32>
      %c0_26 = arith.constant 0 : index
      %c0_27 = arith.constant 0 : index
      %48 = vector.load %arg8[%c0_26, %c0_27] : memref<32x1xf32, #tpu.memory_space<vmem>>, vector<32x1xf32>
      %49 = arith.maximumf %48, %47 : vector<32x1xf32>
      %cst_28 = arith.constant -142.857147 : f32
      %50 = vector.broadcast %cst_28 : f32 to vector<32x1xf32>
      %51 = arith.maximumf %49, %50 : vector<32x1xf32>
      %c0_29 = arith.constant 0 : index
      %c0_30 = arith.constant 0 : index
      %52 = vector.load %arg9[%c0_29, %c0_30] : memref<32x1xf32, #tpu.memory_space<vmem>>, vector<32x1xf32>
      %53 = arith.subf %48, %51 : vector<32x1xf32>
      %54 = math.exp %53 : vector<32x1xf32>
      %55 = arith.mulf %52, %54 : vector<32x1xf32>
      %56 = arith.subf %47, %51 : vector<32x1xf32>
      %57 = math.exp %56 : vector<32x1xf32>
      %58 = arith.addf %55, %57 : vector<32x1xf32>
      %cst_31 = arith.constant -142.857147 : f32
      %59 = vector.broadcast %cst_31 : f32 to vector<32x1xf32>
      %60 = arith.subf %59, %51 : vector<32x1xf32>
      %61 = math.exp %60 : vector<32x1xf32>
      %62 = arith.addf %58, %61 : vector<32x1xf32>
      %63 = math.log %62 : vector<32x1xf32>
      %64 = arith.addf %51, %63 : vector<32x1xf32>
      %65 = arith.subf %64, %47 : vector<32x1xf32>
      %c0_32 = arith.constant 0 : index
      %c0_33 = arith.constant 0 : index
      %66 = vector.load %arg6[%c0_32, %c0_33] : memref<32x1xf32, #tpu.memory_space<vmem>>, vector<32x1xf32>
      tpu.vector_store %arg6[%c0_32, %c0_33], %65 {strides = array<i32>} : memref<32x1xf32, #tpu.memory_space<vmem>>, vector<32x1xf32>,
    } else {
    }
    return
  }
  func.func @transform_0(%arg0: i32, %arg1: i32, %arg2: i32) -> (i32, i32) {
    %c1_i32 = arith.constant 1 : i32
    %0 = arith.muli %arg0, %c1_i32 : i32
    %1 = arith.addi %0, %arg1 : i32
    %c0_i32 = arith.constant 0 : i32
    %c0_i32_0 = arith.constant 0 : i32
    return %1, %c0_i32 : i32, i32
  }
  func.func @transform_1(%arg0: i32, %arg1: i32, %arg2: i32) -> (i32, i32) {
    %c1_i32 = arith.constant 1 : i32
    %0 = arith.muli %arg0, %c1_i32 : i32
    %1 = arith.addi %0, %arg2 : i32
    %c0_i32 = arith.constant 0 : i32
    %c0_i32_0 = arith.constant 0 : i32
    return %1, %c0_i32 : i32, i32
  }
  func.func @transform_2(%arg0: i32, %arg1: i32, %arg2: i32) -> (i32, i32) {
    %c1_i32 = arith.constant 1 : i32
    %0 = arith.muli %arg0, %c1_i32 : i32
    %1 = arith.addi %0, %arg1 : i32
    %c0_i32 = arith.constant 0 : i32
    %c0_i32_0 = arith.constant 0 : i32
    return %1, %c0_i32 : i32, i32
  }
  func.func @transform_3(%arg0: i32, %arg1: i32, %arg2: i32) -> (i32, i32) {
    %c1_i32 = arith.constant 1 : i32
    %0 = arith.muli %arg0, %c1_i32 : i32
    %1 = arith.addi %0, %arg1 : i32
    %c0_i32 = arith.constant 0 : i32
    %c0_i32_0 = arith.constant 0 : i32
    return %1, %c0_i32 : i32, i32
  }
}

</mosaic_0001>

<llo_original>
// kernel: tpu_custom_call.1
$region0: #{tpu_custom_call.1}
  #allocation0 [shape = 'u32[]', space=smem, size = 0x4, offset = 0x4, fixed_abs, tag = 'smem constant byte address 0x4 - core index']
  #allocation1 [shape = 'u32[144,128]{1,0:T(1,128)}', space=vmem, size = 0x12000, scoped, tag = 'internal scratch']
  #allocation2 [shape = 'f32[32,32]{1,0:T(8,128)}', space=vmem, size = 0x4000, scoped, tag = 'scratch operand']
  #allocation3 [shape = 'f32[32,1]{1,0:T(8,128)}', space=vmem, size = 0x4000, scoped, tag = 'scratch operand']
  #allocation4 [shape = 'f32[32,1]{1,0:T(8,128)}', space=vmem, size = 0x4000, scoped, tag = 'scratch operand']
  %s0 = inlined_call_operand.vmem [shape: f32[64,32], index: 0, kind: input, shape index: {}]
  %s1 = inlined_call_operand.vmem [shape: f32[64,32], index: 1, kind: input, shape index: {}]
  %s2 = inlined_call_operand.vmem [shape: f32[64,32], index: 2, kind: input, shape index: {}]
  %s3 = inlined_call_operand.vmem [shape: f32[64,1], index: 3, kind: output, shape index: {}]
  %s4 = sld [smem:[#allocation0]]
  $region57: #{tpu_custom_call.1} parent=0
    _
  %s6 = ssub.s32 1, %s4
  %s7 = scalar_select 0, %s6, %s4
  loop: start=0, step=1, limit=4
  $region2: #{tpu_custom_call.1} parent=0 // loop_pre_header
    _
  $region3: #{tpu_custom_call.1} parent=0 // loop_header
    %s9 = sphi 0, %s13
    %p10 = scmp.ge.s32.totalorder %s9, 4
    %s16 = sphi 0, %s35
    %s17 = sphi 0, %s31
    %s18 = sphi 0, %s27
    %s19 = sphi 0, %s16
    %s20 = sphi 0, %s17
    %s21 = sphi 0, %s18
    %s22 = sphi 0, %s19
    %s23 = sphi 0, %s20
    %s24 = sphi 0, %s21
    %s40 = sphi 0, %s42
    %s43 = sphi 0, %s40
    %s44 = sphi 0, %s43
    %s60 = sphi 0, %s44
    %s68 = sphi 0, %s70
    %s71 = sphi 0, %s68
    %s72 = sphi 0, %s71
    %s88 = sphi 0, %s72
    %s96 = sphi 0, %s98
    %s99 = sphi 0, %s96
    %s100 = sphi 0, %s99
    %s116 = sphi 0, %s100
    %s124 = sphi 0, %s126
    %s127 = sphi 0, %s124
    %s128 = sphi 0, %s127
    %s144 = sphi 0, %s128
  $region4: #{tpu_custom_call.1} parent=0 // loop_header_branch
    %12 = sbr.rel (%p10) target = $region8
  $region5: #{tpu_custom_call.1} parent=0 // loop_body
    %s14 = ssub.s32 %s9, 1
    %s15 = ssub.s32 %s9, 2
    %s25 = sadd.s32 1, %s18
    %p26 = scmp.ge.s32.totalorder %s25, 1
    %s27 = scalar_select %p26, 0, %s25
    %s28 = sadd.s32 1, %s17
    %s29 = scalar_select %p26, %s28, %s17
    %p30 = scmp.ge.s32.totalorder %s29, 1
    %s31 = scalar_select %p30, 0, %s29
    %s32 = sadd.s32 1, %s16
    %s33 = scalar_select %p30, %s32, %s16
    %p34 = scmp.ge.s32.totalorder %s33, 2
    %s35 = scalar_select %p34, 0, %s33
    %s36 = sadd.s32 %s16, %s17
    %s37 = sadd.s32 %s35, %s31
    %s38 = ssub.s32 %s36, %s37
    %p39 = scmp.eq.s32.totalorder %s38, 0
    %s41 = sadd.s32 %s40, 1
    %s42 = scalar_select %p39, %s40, %s41
    %p45 = pneg %p39
    %p46 = scmp.eq.s32.totalorder %s9, 1
    %p47 = por %p45, %p46
    %p48 = scmp.ne.s32.totalorder %s40, %s43
    %p49 = scmp.eq.s32.totalorder %s9, 0
    %p50 = por %p48, %p49
    %p51 = scmp.ne.s32.totalorder %s40, %s43
    %p52 = scmp.eq.s32.totalorder %s14, 1
    %p53 = por %p51, %p52
    %p54 = scmp.ne.s32.totalorder %s43, %s44
    %p55 = scmp.eq.s32.totalorder %s14, 0
    %p56 = por %p54, %p55
    %p57 = scmp.ne.s32.totalorder %s43, %s44
    %p58 = scmp.eq.s32.totalorder %s15, 1
    %p59 = por %p57, %p58
    %p61 = scmp.ne.s32.totalorder %s44, %s60
    %p62 = scmp.eq.s32.totalorder %s15, 0
    %p63 = por %p61, %p62
    %s64 = sadd.s32 %s16, %s18
    %s65 = sadd.s32 %s35, %s27
    %s66 = ssub.s32 %s64, %s65
    %p67 = scmp.eq.s32.totalorder %s66, 0
    %s69 = sadd.s32 %s68, 1
    %s70 = scalar_select %p67, %s68, %s69
    %p73 = pneg %p67
    %p74 = scmp.eq.s32.totalorder %s9, 1
    %p75 = por %p73, %p74
    %p76 = scmp.ne.s32.totalorder %s68, %s71
    %p77 = scmp.eq.s32.totalorder %s9, 0
    %p78 = por %p76, %p77
    %p79 = scmp.ne.s32.totalorder %s68, %s71
    %p80 = scmp.eq.s32.totalorder %s14, 1
    %p81 = por %p79, %p80
    %p82 = scmp.ne.s32.totalorder %s71, %s72
    %p83 = scmp.eq.s32.totalorder %s14, 0
    %p84 = por %p82, %p83
    %p85 = scmp.ne.s32.totalorder %s71, %s72
    %p86 = scmp.eq.s32.totalorder %s15, 1
    %p87 = por %p85, %p86
    %p89 = scmp.ne.s32.totalorder %s72, %s88
    %p90 = scmp.eq.s32.totalorder %s15, 0
    %p91 = por %p89, %p90
    %s92 = sadd.s32 %s16, %s17
    %s93 = sadd.s32 %s35, %s31
    %s94 = ssub.s32 %s92, %s93
    %p95 = scmp.eq.s32.totalorder %s94, 0
    %s97 = sadd.s32 %s96, 1
    %s98 = scalar_select %p95, %s96, %s97
    %p101 = pneg %p95
    %p102 = scmp.eq.s32.totalorder %s9, 1
    %p103 = por %p101, %p102
    %p104 = scmp.ne.s32.totalorder %s96, %s99
    %p105 = scmp.eq.s32.totalorder %s9, 0
    %p106 = por %p104, %p105
    %p107 = scmp.ne.s32.totalorder %s96, %s99
    %p108 = scmp.eq.s32.totalorder %s14, 1
    %p109 = por %p107, %p108
    %p110 = scmp.ne.s32.totalorder %s99, %s100
    %p111 = scmp.eq.s32.totalorder %s14, 0
    %p112 = por %p110, %p111
    %p113 = scmp.ne.s32.totalorder %s99, %s100
    %p114 = scmp.eq.s32.totalorder %s15, 1
    %p115 = por %p113, %p114
    %p117 = scmp.ne.s32.totalorder %s100, %s116
    %p118 = scmp.eq.s32.totalorder %s15, 0
    %p119 = por %p117, %p118
    %s120 = sadd.s32 %s16, %s17
    %s121 = sadd.s32 %s35, %s31
    %s122 = ssub.s32 %s120, %s121
    %p123 = scmp.eq.s32.totalorder %s122, 0
    %s125 = sadd.s32 %s124, 1
    %s126 = scalar_select %p123, %s124, %s125
    %p129 = pneg %p123
    %p130 = scmp.eq.s32.totalorder %s9, 1
    %p131 = por %p129, %p130
    %p132 = scmp.ne.s32.totalorder %s124, %s127
    %p133 = scmp.eq.s32.totalorder %s9, 0
    %p134 = por %p132, %p133
    %p135 = scmp.ne.s32.totalorder %s124, %s127
    %p136 = scmp.eq.s32.totalorder %s14, 1
    %p137 = por %p135, %p136
    %p138 = scmp.ne.s32.totalorder %s127, %s128
    %p139 = scmp.eq.s32.totalorder %s14, 0
    %p140 = por %p138, %p139
    %p141 = scmp.ne.s32.totalorder %s127, %s128
    %p142 = scmp.eq.s32.totalorder %s15, 1
    %p143 = por %p141, %p142
    %p145 = scmp.ne.s32.totalorder %s128, %s144
    %p146 = scmp.eq.s32.totalorder %s15, 0
    %p147 = por %p145, %p146
    %p148 = scmp.le.s32.totalorder 1, %s9
    %p149 = scmp.lt.s32.totalorder %s9, 3
    %p150 = pnand %p148, %p149
    %p151 = pneg %p150
    // Predicated region
    $region9: #{tpu_custom_call.1} parent=5 // pred_check
      _
    $region10: #{tpu_custom_call.1} parent=5 // pred_check_branch
      %153 = sbr.rel (%p150) target = $region12
    $region11: #{tpu_custom_call.1} parent=5 // pred_region
      %s154 = ssub.s32 %s9, 1
    $region12: #{tpu_custom_call.1} parent=5 // pred_fallthru
      _
    %p155 = scmp.lt.s32.totalorder %s9, 2
    // Predicated region
    $region13: #{tpu_custom_call.1} parent=5 // pred_check
      %p156 = pneg %p155
    $region14: #{tpu_custom_call.1} parent=5 // pred_check_branch
      %158 = sbr.rel (%p156) target = $region16
    $region15: #{tpu_custom_call.1} parent=5 // pred_region
      // Predicated region
      $region17: #{tpu_custom_call.1} parent=15 // pred_check
        %p159 = pneg %p50
      $region18: #{tpu_custom_call.1} parent=15 // pred_check_branch
        %161 = sbr.rel (%p159) target = $region20
      $region19: #{tpu_custom_call.1} parent=15 // pred_region
        %s162 = sadd.s32 %s16, %s17
        %s163 = smul.u32 4, %s162
        %p164 = scmp.lt.s32.totalorder %s163, 7
        %s165 = scalar_select %p164, %s163, 7
        %s166 = smul.addr %s165, 8
        %s167 = scalar_lea.vmem %s0, %s166
        %s168 = sadd.s32 %s16, %s17
        %s169 = smul.u32 4, %s168
      $region20: #{tpu_custom_call.1} parent=15 // pred_fallthru
        _
      // Predicated region
      $region21: #{tpu_custom_call.1} parent=15 // pred_check
        %p170 = pneg %p78
      $region22: #{tpu_custom_call.1} parent=15 // pred_check_branch
        %172 = sbr.rel (%p170) target = $region24
      $region23: #{tpu_custom_call.1} parent=15 // pred_region
        %s173 = sadd.s32 %s16, %s18
        %s174 = smul.u32 4, %s173
        %p175 = scmp.lt.s32.totalorder %s174, 7
        %s176 = scalar_select %p175, %s174, 7
        %s177 = smul.addr %s176, 8
        %s178 = scalar_lea.vmem %s1, %s177
        %s179 = sadd.s32 %s16, %s18
        %s180 = smul.u32 4, %s179
      $region24: #{tpu_custom_call.1} parent=15 // pred_fallthru
        _
      // Predicated region
      $region25: #{tpu_custom_call.1} parent=15 // pred_check
        %p181 = pneg %p106
      $region26: #{tpu_custom_call.1} parent=15 // pred_check_branch
        %183 = sbr.rel (%p181) target = $region28
      $region27: #{tpu_custom_call.1} parent=15 // pred_region
        %s184 = sadd.s32 %s16, %s17
        %s185 = smul.u32 4, %s184
        %p186 = scmp.lt.s32.totalorder %s185, 7
        %s187 = scalar_select %p186, %s185, 7
        %s188 = smul.addr %s187, 8
        %s189 = scalar_lea.vmem %s2, %s188
        %s190 = sadd.s32 %s16, %s17
        %s191 = smul.u32 4, %s190
      $region28: #{tpu_custom_call.1} parent=15 // pred_fallthru
        _
    $region16: #{tpu_custom_call.1} parent=5 // pred_fallthru
      _
    %p192 = scmp.le.s32.totalorder 1, %s9
    %p193 = scmp.lt.s32.totalorder %s9, 3
    %p194 = pnand %p192, %p193
    %p195 = pneg %p194
    // Predicated region
    $region29: #{tpu_custom_call.1} parent=5 // pred_check
      _
    $region30: #{tpu_custom_call.1} parent=5 // pred_check_branch
      %197 = sbr.rel (%p194) target = $region32
    $region31: #{tpu_custom_call.1} parent=5 // pred_region
      %s198 = ssub.s32 %s9, 1
      %s199 = sadd.s32 %s19, %s20
      %s200 = smul.u32 4, %s199
      %p201 = scmp.lt.s32.totalorder %s200, 7
      %s202 = scalar_select %p201, %s200, 7
      %s203 = smul.addr %s202, 8
      %s204 = scalar_lea.vmem %s0, %s203
      %p205 = pneg %p56
      %p206 = pneg %p53
      %s207 = sadd.s32 %s19, %s21
      %s208 = smul.u32 4, %s207
      %p209 = scmp.lt.s32.totalorder %s208, 7
      %s210 = scalar_select %p209, %s208, 7
      %s211 = smul.addr %s210, 8
      %s212 = scalar_lea.vmem %s1, %s211
      %p213 = pneg %p84
      %p214 = pneg %p81
      %s215 = sadd.s32 %s19, %s20
      %s216 = smul.u32 4, %s215
      %p217 = scmp.lt.s32.totalorder %s216, 7
      %s218 = scalar_select %p217, %s216, 7
      %s219 = smul.addr %s218, 8
      %s220 = scalar_lea.vmem %s2, %s219
      %p221 = pneg %p112
      %p222 = pneg %p109
      %p223 = pneg %p140
      %p224 = pneg %p137
      %s225 = sadd.s32 %s19, %s20
      %s226 = smul.u32 4, %s225
      %p227 = scmp.lt.s32.totalorder %s226, 7
      %s228 = scalar_select %p227, %s226, 7
      %s229 = smul.addr %s228, 8
      %s230 = scalar_lea.vmem %s3, %s229
      %s231 = sadd.s32 %s19, %s20
      %s232 = smul.u32 4, %s231
      %p233 = scmp.lt.s32.totalorder %s232, 7
      %s234 = scalar_select %p233, %s232, 7
      %s235 = smul.addr %s234, 8
      %s236 = scalar_lea.vmem %s0, %s235
      %s237 = sadd.s32 %s19, %s20
      %s238 = smul.u32 4, %s237
      %s239 = sadd.s32 %s19, %s21
      %s240 = smul.u32 4, %s239
      %p241 = scmp.lt.s32.totalorder %s240, 7
      %s242 = scalar_select %p241, %s240, 7
      %s243 = smul.addr %s242, 8
      %s244 = scalar_lea.vmem %s1, %s243
      %s245 = sadd.s32 %s19, %s21
      %s246 = smul.u32 4, %s245
      %s247 = sadd.s32 %s19, %s20
      %s248 = smul.u32 4, %s247
      %p249 = scmp.lt.s32.totalorder %s248, 7
      %s250 = scalar_select %p249, %s248, 7
      %s251 = smul.addr %s250, 8
      %s252 = scalar_lea.vmem %s2, %s251
      %s253 = sadd.s32 %s19, %s20
      %s254 = smul.u32 4, %s253
      %s255 = sadd.s32 %s19, %s20
      %s256 = smul.u32 4, %s255
      %p257 = scmp.lt.s32.totalorder %s256, 7
      %s258 = scalar_select %p257, %s256, 7
      %s259 = smul.addr %s258, 8
      %s260 = scalar_lea.vmem %s3, %s259
      %s261 = sadd.s32 %s19, %s20
      %s262 = smul.u32 4, %s261
      %p263 = scmp.eq.s32.totalorder %s21, 0
      // Predicated region
      $region33: #{tpu_custom_call.1} parent=31 // pred_check
        %p264 = pneg %p263
      $region34: #{tpu_custom_call.1} parent=31 // pred_check_branch
        %266 = sbr.rel (%p264) target = $region36
      $region35: #{tpu_custom_call.1} parent=31 // pred_region
        %vm267 = vcmask 7168
        %268 = vst.msk [vmem:[#allocation3] sm:$0xff] %vm267, -inf
        %269 = vst.msk [vmem:[#allocation3 + $0x8] sm:$0xff] %vm267, -inf
        %270 = vst.msk [vmem:[#allocation3 + $0x10] sm:$0xff] %vm267, -inf
        %271 = vst.msk [vmem:[#allocation3 + $0x18] sm:$0xff] %vm267, -inf
        %272 = vst.msk [vmem:[#allocation4] sm:$0xff] %vm267, 0.0
        %273 = vst.msk [vmem:[#allocation4 + $0x8] sm:$0xff] %vm267, 0.0
        %274 = vst.msk [vmem:[#allocation4 + $0x10] sm:$0xff] %vm267, 0.0
        %275 = vst.msk [vmem:[#allocation4 + $0x18] sm:$0xff] %vm267, 0.0
        %v276 = vld [vmem:[%s236] sm:$0xff]
        %v277 = vld [vmem:[%s236 + $0x8] sm:$0xff]
        %v278 = vld [vmem:[%s236 + $0x10] sm:$0xff]
        %v279 = vld [vmem:[%s236 + $0x18] sm:$0xff]
        %v280 = vmul.f32 %v276, 14.285714
        %v281 = vmul.f32 %v277, 14.285714
        %v282 = vmul.f32 %v278, 14.285714
        %v283 = vmul.f32 %v279, 14.285714
        %vm284 = vcmask 261120
        %285 = vst.msk [vmem:[#allocation2] sm:$0xff] %vm284, %v280
        %286 = vst.msk [vmem:[#allocation2 + $0x8] sm:$0xff] %vm284, %v281
        %287 = vst.msk [vmem:[#allocation2 + $0x10] sm:$0xff] %vm284, %v282
        %288 = vst.msk [vmem:[#allocation2 + $0x18] sm:$0xff] %vm284, %v283
      $region36: #{tpu_custom_call.1} parent=31 // pred_fallthru
        _
      %v289 = vld [vmem:[%s244] sm:$0xff]
      %v290 = vld [vmem:[%s244 + $0x8] sm:$0xff]
      %v291 = vld [vmem:[%s244 + $0x10] sm:$0xff]
      %v292 = vld [vmem:[%s244 + $0x18] sm:$0xff]
      %v293 = vld [vmem:[#allocation2] sm:$0xff]
      %v294 = vld [vmem:[#allocation2 + $0x8] sm:$0xff]
      %v295 = vld [vmem:[#allocation2 + $0x10] sm:$0xff]
      %v296 = vld [vmem:[#allocation2 + $0x18] sm:$0xff]
      %vm297 = vcmask 261120
      %v299 = vsel %vm297, %v293, 0
      %v302 = vsel %vm297, %v294, 0
      %v305 = vsel %vm297, %v295, 0
      %v308 = vsel %vm297, %v296, 0
      %v311 = vsel %vm297, %v289, 0
      %v314 = vsel %vm297, %v290, 0
      %v317 = vsel %vm297, %v291, 0
      %v320 = vsel %vm297, %v292, 0
      %322 = vmatprep.subr.mxu0 0.0
      %323 = vmatpush1.xpose.msra.mxu0 %v311
      %324 = vmatprep.subr.mxu0 0.0
      %325 = vmatpush1.xpose.msra.mxu0 %v314
      %326 = vmatprep.subr.mxu0 0.0
      %327 = vmatpush1.xpose.msra.mxu0 %v317
      %328 = vmatprep.subr.mxu0 0.0
      %329 = vmatpush1.xpose.msra.mxu0 %v320
      %330 = vmatprep.subr.mxu0 0.0
      %331 = vmatpush1.xpose.msra.mxu0 0.0
      %332 = vmatprep.subr.mxu0 0.0
      %333 = vmatpush1.xpose.msra.mxu0 0.0
      %334 = vmatprep.subr.mxu0 0.0
      %335 = vmatpush1.xpose.msra.mxu0 0.0
      %336 = vmatprep.subr.mxu0 0.0
      %337 = vmatpush1.xpose.msra.mxu0 0.0
      %338 = vmatprep.subr.mxu0 0.0
      %339 = vmatpush1.xpose.msra.mxu0 0.0
      %340 = vmatprep.subr.mxu0 0.0
      %341 = vmatpush1.xpose.msra.mxu0 0.0
      %342 = vmatprep.subr.mxu0 0.0
      %343 = vmatpush1.xpose.msra.mxu0 0.0
      %344 = vmatprep.subr.mxu0 0.0
      %345 = vmatpush1.xpose.msra.mxu0 0.0
      %346 = vmatprep.subr.mxu0 0.0
      %347 = vmatpush1.xpose.msra.mxu0 0.0
      %348 = vmatprep.subr.mxu0 0.0
      %349 = vmatpush1.xpose.msra.mxu0 0.0
      %350 = vmatprep.subr.mxu0 0.0
      %351 = vmatpush1.xpose.msra.mxu0 0.0
      %352 = vmatprep.subr.mxu0 0.0
      %353 = vmatpush1.xpose.msra.mxu0 0.0
      %354 = vmatprep.subr.mxu0 0.0
      %355 = vmatpush1.xpose.msra.mxu0 0.0
      %356 = vmatprep.subr.mxu0 0.0
      %357 = vmatpush1.xpose.msra.mxu0 0.0
      %358 = vmatprep.subr.mxu0 0.0
      %359 = vmatpush1.xpose.msra.mxu0 0.0
      %360 = vmatprep.subr.mxu0 0.0
      %361 = vmatpush1.xpose.msra.mxu0 0.0
      %362 = vmatprep.subr.mxu0 0.0
      %363 = vmatpush1.xpose.msra.mxu0 0.0
      %364 = vmatprep.subr.mxu0 0.0
      %365 = vmatpush1.xpose.msra.mxu0 0.0
      %366 = vmatprep.subr.mxu0 0.0
      %367 = vmatpush1.xpose.msra.mxu0 0.0
      %368 = vmatprep.subr.mxu0 0.0
      %369 = vmatpush1.xpose.msra.mxu0 0.0
      %370 = vmatprep.subr.mxu0 0.0
      %371 = vmatpush1.xpose.msra.mxu0 0.0
      %372 = vmatprep.subr.mxu0 0.0
      %373 = vmatpush1.xpose.msra.mxu0 0.0
      %374 = vmatprep.subr.mxu0 0.0
      %375 = vmatpush1.xpose.msra.mxu0 0.0
      %376 = vmatprep.subr.mxu0 0.0
      %377 = vmatpush1.xpose.msra.mxu0 0.0
      %378 = vmatprep.subr.mxu0 0.0
      %379 = vmatpush1.xpose.msra.mxu0 0.0
      %380 = vmatprep.subr.mxu0 0.0
      %381 = vmatpush1.xpose.msra.mxu0 0.0
      %382 = vmatprep.subr.mxu0 0.0
      %383 = vmatpush1.xpose.msra.mxu0 0.0
      %384 = vmatprep.subr.mxu0 0.0
      %385 = vmatpush1.xpose.msra.mxu0 0.0
      %386 = vmatprep.mubr.f32.mxu0 0.0
      %387 = vmatmul.mubr.f32.gmra.mrb[0].mxu0 %v299
      %v388 = vpop.f32.mrb[0].mxu0
      %v389 = vadd.f32 0.0, %v388
      %v390 = vpop.f32.mrb[0].mxu0
      %391 = vmatprep.mubr.f32.mxu0 0.0
      %392 = vmatmul.mubr.f32.gmra.mrb[0].mxu0 %v302
      %v393 = vpop.f32.mrb[0].mxu0
      %v394 = vadd.f32 0.0, %v393
      %v395 = vpop.f32.mrb[0].mxu0
      %396 = vmatprep.mubr.f32.mxu0 0.0
      %397 = vmatmul.mubr.f32.gmra.mrb[0].mxu0 %v305
      %v398 = vpop.f32.mrb[0].mxu0
      %v399 = vadd.f32 0.0, %v398
      %v400 = vpop.f32.mrb[0].mxu0
      %401 = vmatprep.mubr.f32.mxu0 0.0
      %402 = vmatmul.mubr.f32.gmra.mrb[0].mxu0 %v308
      %v403 = vpop.f32.mrb[0].mxu0
      %v404 = vadd.f32 0.0, %v403
      %v405 = vpop.f32.mrb[0].mxu0
      %406 = vdwg.mxu0
      %v407 = vlaneseq
      %v408 = vand.u32 %v407, 127
      %s409 = smul.u32 %s21, 32
      %v410 = vstv %s409
      %v411 = vadd.s32 %v408, %v410
      %vm412 = vcmp.lt.s32.totalorder %v411, 8
      %v413 = vsel %vm412, %v389, -1e+30
      %v414 = vsel %vm412, %v394, -1e+30
      %v415 = vsel %vm412, %v399, -1e+30
      %v416 = vsel %vm412, %v404, -1e+30
      %v417 = vld [vmem:[#allocation3] sm:$0xff]
      %v418 = vld [vmem:[#allocation3 + $0x8] sm:$0xff]
      %v419 = vld [vmem:[#allocation3 + $0x10] sm:$0xff]
      %v420 = vld [vmem:[#allocation3 + $0x18] sm:$0xff]
      %v421 = vsel %vm297, %v413, -inf
      %422 = vmax.xlane.f32.xlu0 %v421
      %v423 = vpop.xlane.xlu0 %422
      %v424 = vsel %vm297, %v414, -inf
      %425 = vmax.xlane.f32.xlu0 %v424
      %v426 = vpop.xlane.xlu0 %425
      %v427 = vsel %vm297, %v415, -inf
      %428 = vmax.xlane.f32.xlu0 %v427
      %v429 = vpop.xlane.xlu0 %428
      %v430 = vsel %vm297, %v416, -inf
      %431 = vmax.xlane.f32.xlu0 %v430
      %v432 = vpop.xlane.xlu0 %431
      %v433 = vmax.f32 %v417, %v423
      %v434 = vmax.f32 %v418, %v426
      %v435 = vmax.f32 %v419, %v429
      %v436 = vmax.f32 %v420, %v432
      %438 = vset.pattern.permute.xlu0 0
      %439 = vperm.xlu0 %438, %v433
      %v440 = vpop.permute.xlu0 %439
      %443 = vset.pattern.permute.xlu0 0
      %444 = vperm.xlu0 %443, %v434
      %v445 = vpop.permute.xlu0 %444
      %448 = vset.pattern.permute.xlu0 0
      %449 = vperm.xlu0 %448, %v435
      %v450 = vpop.permute.xlu0 %449
      %453 = vset.pattern.permute.xlu0 0
      %454 = vperm.xlu0 %453, %v436
      %v455 = vpop.permute.xlu0 %454
      %v457 = vsub.f32 %v413, %v440
      %v458 = vsub.f32 %v414, %v445
      %v459 = vsub.f32 %v415, %v450
      %v460 = vsub.f32 %v416, %v455
      %v461 = vmul.f32 %v457, 1.442695
      %v462 = vpow.pop %v461
      %v463 = vmul.f32 %v458, 1.442695
      %v464 = vpow.pop %v463
      %v465 = vmul.f32 %v459, 1.442695
      %v466 = vpow.pop %v465
      %v467 = vmul.f32 %v460, 1.442695
      %v468 = vpow.pop %v467
      %v469 = vsub.f32 %v417, %v433
      %v470 = vsub.f32 %v418, %v434
      %v471 = vsub.f32 %v419, %v435
      %v472 = vsub.f32 %v420, %v436
      %v473 = vmul.f32 %v469, 1.442695
      %v474 = vpow.pop %v473
      %v475 = vmul.f32 %v470, 1.442695
      %v476 = vpow.pop %v475
      %v477 = vmul.f32 %v471, 1.442695
      %v478 = vpow.pop %v477
      %v479 = vmul.f32 %v472, 1.442695
      %v480 = vpow.pop %v479
      %v481 = vld [vmem:[#allocation4] sm:$0xff]
      %v482 = vld [vmem:[#allocation4 + $0x8] sm:$0xff]
      %v483 = vld [vmem:[#allocation4 + $0x10] sm:$0xff]
      %v484 = vld [vmem:[#allocation4 + $0x18] sm:$0xff]
      %v485 = vmul.f32 %v474, %v481
      %v486 = vmul.f32 %v476, %v482
      %v487 = vmul.f32 %v478, %v483
      %v488 = vmul.f32 %v480, %v484
      %v489 = vsel %vm297, %v462, 0.0
      %490 = vadd.xlane.f32.xlu0 %v489
      %v491 = vpop.xlane.xlu0 %490
      %v492 = vsel %vm297, %v464, 0.0
      %493 = vadd.xlane.f32.xlu0 %v492
      %v494 = vpop.xlane.xlu0 %493
      %v495 = vsel %vm297, %v466, 0.0
      %496 = vadd.xlane.f32.xlu0 %v495
      %v497 = vpop.xlane.xlu0 %496
      %v498 = vsel %vm297, %v468, 0.0
      %499 = vadd.xlane.f32.xlu0 %v498
      %v500 = vpop.xlane.xlu0 %499
      %v501 = vadd.f32 %v485, %v491
      %v502 = vadd.f32 %v486, %v494
      %v503 = vadd.f32 %v487, %v497
      %v504 = vadd.f32 %v488, %v500
      %vm505 = vcmask 7168
      %506 = vst.msk [vmem:[#allocation4] sm:$0xff] %vm505, %v501
      %507 = vst.msk [vmem:[#allocation4 + $0x8] sm:$0xff] %vm505, %v502
      %508 = vst.msk [vmem:[#allocation4 + $0x10] sm:$0xff] %vm505, %v503
      %509 = vst.msk [vmem:[#allocation4 + $0x18] sm:$0xff] %vm505, %v504
      %510 = vst.msk [vmem:[#allocation3] sm:$0xff] %vm505, %v433
      %511 = vst.msk [vmem:[#allocation3 + $0x8] sm:$0xff] %vm505, %v434
      %512 = vst.msk [vmem:[#allocation3 + $0x10] sm:$0xff] %vm505, %v435
      %513 = vst.msk [vmem:[#allocation3 + $0x18] sm:$0xff] %vm505, %v436
      %p514 = scmp.ge.s32.totalorder %s21, %s20
      %s515 = sadd.s32 %s20, 1
      %p516 = scmp.lt.s32.totalorder %s21, %s515
      %p517 = pnand %p514, %p516
      %p518 = pneg %p517
      // Predicated region
      $region37: #{tpu_custom_call.1} parent=31 // pred_check
        _
      $region38: #{tpu_custom_call.1} parent=31 // pred_check_branch
        %520 = sbr.rel (%p517) target = $region40
      $region39: #{tpu_custom_call.1} parent=31 // pred_region
        %v521 = vlaneseq
        %v522 = vshrl.u32 %v521, 7
        %v523 = vadd.s32 %v522, 8
        %v524 = vadd.s32 %v522, 16
        %v525 = vadd.s32 %v522, 24
        %s526 = smul.u32 %s20, 32
        %v527 = vstv %s526
        %v528 = vadd.s32 %v522, %v527
        %v529 = vadd.s32 %v523, %v527
        %v530 = vadd.s32 %v524, %v527
        %v531 = vadd.s32 %v525, %v527
        %v532 = vld [vmem:[#allocation4] sm:$0xff]
        %v533 = vld [vmem:[#allocation4 + $0x8] sm:$0xff]
        %v534 = vld [vmem:[#allocation4 + $0x10] sm:$0xff]
        %v535 = vld [vmem:[#allocation4 + $0x18] sm:$0xff]
        %vm536 = vcmp.eq.s32.totalorder %v528, %v411
        %vm537 = vcmp.eq.s32.totalorder %v529, %v411
        %vm538 = vcmp.eq.s32.totalorder %v530, %v411
        %vm539 = vcmp.eq.s32.totalorder %v531, %v411
        %v540 = vsel %vm536, %v462, 0.0
        %v541 = vsel %vm537, %v464, 0.0
        %v542 = vsel %vm538, %v466, 0.0
        %v543 = vsel %vm539, %v468, 0.0
        %v544 = vsel %vm297, %v540, 0.0
        %545 = vadd.xlane.f32.xlu0 %v544
        %v546 = vpop.xlane.xlu0 %545
        %v547 = vsel %vm297, %v541, 0.0
        %548 = vadd.xlane.f32.xlu0 %v547
        %v549 = vpop.xlane.xlu0 %548
        %v550 = vsel %vm297, %v542, 0.0
        %551 = vadd.xlane.f32.xlu0 %v550
        %v552 = vpop.xlane.xlu0 %551
        %v553 = vsel %vm297, %v543, 0.0
        %554 = vadd.xlane.f32.xlu0 %v553
        %v555 = vpop.xlane.xlu0 %554
        %v556 = vsub.f32 %v532, %v546
        %v557 = vsub.f32 %v533, %v549
        %v558 = vsub.f32 %v534, %v552
        %v559 = vsub.f32 %v535, %v555
        %560 = vst.msk [vmem:[#allocation4] sm:$0xff] %vm505, %v556
        %561 = vst.msk [vmem:[#allocation4 + $0x8] sm:$0xff] %vm505, %v557
        %562 = vst.msk [vmem:[#allocation4 + $0x10] sm:$0xff] %vm505, %v558
        %563 = vst.msk [vmem:[#allocation4 + $0x18] sm:$0xff] %vm505, %v559
      $region40: #{tpu_custom_call.1} parent=31 // pred_fallthru
        _
      // Predicated region
      $region41: #{tpu_custom_call.1} parent=31 // pred_check
        %p564 = pneg %p263
      $region42: #{tpu_custom_call.1} parent=31 // pred_check_branch
        %566 = sbr.rel (%p564) target = $region44
      $region43: #{tpu_custom_call.1} parent=31 // pred_region
        %v567 = vld [vmem:[%s236] sm:$0xff]
        %v568 = vld [vmem:[%s236 + $0x8] sm:$0xff]
        %v569 = vld [vmem:[%s236 + $0x10] sm:$0xff]
        %v570 = vld [vmem:[%s236 + $0x18] sm:$0xff]
        %v571 = vmul.f32 %v567, 14.285714
        %v572 = vmul.f32 %v568, 14.285714
        %v573 = vmul.f32 %v569, 14.285714
        %v574 = vmul.f32 %v570, 14.285714
        %v575 = vld [vmem:[%s252] sm:$0xff]
        %v576 = vld [vmem:[%s252 + $0x8] sm:$0xff]
        %v577 = vld [vmem:[%s252 + $0x10] sm:$0xff]
        %v578 = vld [vmem:[%s252 + $0x18] sm:$0xff]
        %v579 = vmul.f32 %v571, %v575
        %v580 = vmul.f32 %v572, %v576
        %v581 = vmul.f32 %v573, %v577
        %v582 = vmul.f32 %v574, %v578
        %v583 = vsel %vm297, %v579, 0.0
        %584 = vadd.xlane.f32.xlu0 %v583
        %v585 = vpop.xlane.xlu0 %584
        %v586 = vsel %vm297, %v580, 0.0
        %587 = vadd.xlane.f32.xlu0 %v586
        %v588 = vpop.xlane.xlu0 %587
        %v589 = vsel %vm297, %v581, 0.0
        %590 = vadd.xlane.f32.xlu0 %v589
        %v591 = vpop.xlane.xlu0 %590
        %v592 = vsel %vm297, %v582, 0.0
        %593 = vadd.xlane.f32.xlu0 %v592
        %v594 = vpop.xlane.xlu0 %593
        %v595 = vld [vmem:[#allocation3] sm:$0xff]
        %v596 = vld [vmem:[#allocation3 + $0x8] sm:$0xff]
        %v597 = vld [vmem:[#allocation3 + $0x10] sm:$0xff]
        %v598 = vld [vmem:[#allocation3 + $0x18] sm:$0xff]
        %v599 = vmax.f32 %v595, %v585
        %v600 = vmax.f32 %v596, %v588
        %v601 = vmax.f32 %v597, %v591
        %v602 = vmax.f32 %v598, %v594
        %v603 = vmax.f32 %v599, -142.85715
        %v604 = vmax.f32 %v600, -142.85715
        %v605 = vmax.f32 %v601, -142.85715
        %v606 = vmax.f32 %v602, -142.85715
        %v607 = vld [vmem:[#allocation4] sm:$0xff]
        %v608 = vld [vmem:[#allocation4 + $0x8] sm:$0xff]
        %v609 = vld [vmem:[#allocation4 + $0x10] sm:$0xff]
        %v610 = vld [vmem:[#allocation4 + $0x18] sm:$0xff]
        %v611 = vsub.f32 %v595, %v603
        %v612 = vsub.f32 %v596, %v604
        %v613 = vsub.f32 %v597, %v605
        %v614 = vsub.f32 %v598, %v606
        %v615 = vmul.f32 %v611, 1.442695
        %v616 = vpow.pop %v615
        %v617 = vmul.f32 %v612, 1.442695
        %v618 = vpow.pop %v617
        %v619 = vmul.f32 %v613, 1.442695
        %v620 = vpow.pop %v619
        %v621 = vmul.f32 %v614, 1.442695
        %v622 = vpow.pop %v621
        %v623 = vmul.f32 %v607, %v616
        %v624 = vmul.f32 %v608, %v618
        %v625 = vmul.f32 %v609, %v620
        %v626 = vmul.f32 %v610, %v622
        %v627 = vsub.f32 %v585, %v603
        %v628 = vsub.f32 %v588, %v604
        %v629 = vsub.f32 %v591, %v605
        %v630 = vsub.f32 %v594, %v606
        %v631 = vmul.f32 %v627, 1.442695
        %v632 = vpow.pop %v631
        %v633 = vmul.f32 %v628, 1.442695
        %v634 = vpow.pop %v633
        %v635 = vmul.f32 %v629, 1.442695
        %v636 = vpow.pop %v635
        %v637 = vmul.f32 %v630, 1.442695
        %v638 = vpow.pop %v637
        %v639 = vadd.f32 %v623, %v632
        %v640 = vadd.f32 %v624, %v634
        %v641 = vadd.f32 %v625, %v636
        %v642 = vadd.f32 %v626, %v638
        %v643 = vsub.f32 -142.85715, %v603
        %v644 = vsub.f32 -142.85715, %v604
        %v645 = vsub.f32 -142.85715, %v605
        %v646 = vsub.f32 -142.85715, %v606
        %v647 = vmul.f32 %v643, 1.442695
        %v648 = vpow.pop %v647
        %v649 = vmul.f32 %v644, 1.442695
        %v650 = vpow.pop %v649
        %v651 = vmul.f32 %v645, 1.442695
        %v652 = vpow.pop %v651
        %v653 = vmul.f32 %v646, 1.442695
        %v654 = vpow.pop %v653
        %v655 = vadd.f32 %v639, %v648
        %v656 = vadd.f32 %v640, %v650
        %v657 = vadd.f32 %v641, %v652
        %v658 = vadd.f32 %v642, %v654
        %v659 = vlog2.pop %v655
        %v660 = vmul.f32 %v659, 0.6931472
        %v661 = vlog2.pop %v656
        %v662 = vmul.f32 %v661, 0.6931472
        %v663 = vlog2.pop %v657
        %v664 = vmul.f32 %v663, 0.6931472
        %v665 = vlog2.pop %v658
        %v666 = vmul.f32 %v665, 0.6931472
        %v667 = vadd.f32 %v603, %v660
        %v668 = vadd.f32 %v604, %v662
        %v669 = vadd.f32 %v605, %v664
        %v670 = vadd.f32 %v606, %v666
        %v671 = vsub.f32 %v667, %v585
        %v672 = vsub.f32 %v668, %v588
        %v673 = vsub.f32 %v669, %v591
        %v674 = vsub.f32 %v670, %v594
        %675 = vst.msk [vmem:[%s260] sm:$0xff] %vm505, %v671
        %676 = vst.msk [vmem:[%s260 + $0x8] sm:$0xff] %vm505, %v672
        %677 = vst.msk [vmem:[%s260 + $0x10] sm:$0xff] %vm505, %v673
        %678 = vst.msk [vmem:[%s260 + $0x18] sm:$0xff] %vm505, %v674
      $region44: #{tpu_custom_call.1} parent=31 // pred_fallthru
        _
      %s679 = sadd.s32 %s19, %s20
      %s680 = smul.u32 4, %s679
      %p681 = scmp.lt.s32.totalorder %s680, 7
      %s682 = scalar_select %p681, %s680, 7
      %s683 = smul.addr %s682, 8
      %s684 = scalar_lea.vmem %s3, %s683
      // Predicated region
      $region45: #{tpu_custom_call.1} parent=31 // pred_check
        %p685 = pneg %p137
      $region46: #{tpu_custom_call.1} parent=31 // pred_check_branch
        %687 = sbr.rel (%p685) target = $region48
      $region47: #{tpu_custom_call.1} parent=31 // pred_region
        %s688 = sadd.s32 %s19, %s20
        %s689 = smul.u32 4, %s688
      $region48: #{tpu_custom_call.1} parent=31 // pred_fallthru
        _
    $region32: #{tpu_custom_call.1} parent=5 // pred_fallthru
      _
    %p690 = scmp.le.s32.totalorder 2, %s9
    // Predicated region
    $region49: #{tpu_custom_call.1} parent=5 // pred_check
      %p691 = pneg %p690
    $region50: #{tpu_custom_call.1} parent=5 // pred_check_branch
      %693 = sbr.rel (%p691) target = $region52
    $region51: #{tpu_custom_call.1} parent=5 // pred_region
      %s694 = ssub.s32 %s9, 2
      // Predicated region
      $region53: #{tpu_custom_call.1} parent=51 // pred_check
        %p695 = pneg %p143
      $region54: #{tpu_custom_call.1} parent=51 // pred_check_branch
        %697 = sbr.rel (%p695) target = $region56
      $region55: #{tpu_custom_call.1} parent=51 // pred_region
        %s698 = sadd.s32 %s22, %s23
        %s699 = smul.u32 4, %s698
        %p700 = scmp.lt.s32.totalorder %s699, 7
        %s701 = scalar_select %p700, %s699, 7
        %s702 = smul.addr %s701, 8
        %s703 = scalar_lea.vmem %s3, %s702
      $region56: #{tpu_custom_call.1} parent=51 // pred_fallthru
        _
    $region52: #{tpu_custom_call.1} parent=5 // pred_fallthru
      _
  $region6: #{tpu_custom_call.1} parent=0 // loop_footer
    %s13 = sadd.s32 1, %s9
  $region7: #{tpu_custom_call.1} parent=0 // loop_footer_branch
    %8 = sbr.rel target = $region3
  $region8: #{tpu_custom_call.1} parent=0 // loop_exit
    _

</llo_original>
